<compile_context>
chip_gen: v7x
topology: tpu7x:2x2x1
jax: 0.10.0
libtpu: 0.0.40
codegen_flags: <defaults>
</compile_context>

<pallas_src>
import math

import jax
import jax.numpy as jnp
from jax.experimental import pallas as pl
from jax.experimental.pallas import tpu as pltpu

_SMALL_INPUT_BYTES = 1 << 20     # 2D inputs below this: fused XLA beats a launch
_VMEM_SLACK_BYTES = 8 << 20      # headroom for Mosaic internal scratch
_MAX_LANE_WIDTH_2D = 8192        # cap for the lane-densified 2D view
_BUDGET_CACHE = None


# ----------------------------------------------------------------------------
# Generation-aware budgets & tiling helpers
# ----------------------------------------------------------------------------
def _vmem_budgets():
    """(target x-tile bytes, usable scoped-VMEM bytes), per TPU generation."""
    global _BUDGET_CACHE
    if _BUDGET_CACHE is None:
        try:
            cap = int(pltpu.get_tpu_info().vmem_capacity_bytes)
            if cap <= 0:
                cap = 64 << 20
        except Exception:
            cap = 64 << 20                      # conservative (v7x-sized) default
        if cap >= (100 << 20):                  # v5e / v6e: 128 MiB physical VMEM
            target = 6 << 20
        else:                                   # v7x: 64 MiB physical VMEM
            target = 4 << 20
        usable = int(cap * 0.7)                 # leave headroom for the compiler
        _BUDGET_CACHE = (target, usable)
    return _BUDGET_CACHE


def _sublane_multiple(dtype):
    # 8 rows for f32, 16 for bf16, 32 for int8/fp8 (native packed tile heights).
    return max(8, 32 // jnp.dtype(dtype).itemsize)


def _padded_row_bytes(lane_extent, itemsize):
    """VMEM bytes of one row of a (rows, lane_extent) block (lane-padded to 128)."""
    return ((lane_extent + 127) // 128) * 128 * itemsize


def _round_down(x, m):
    return max(m, (x // m) * m)


def _pick_row_tile(rows, x_row_bytes, target_bytes, sub):
    """Largest divisor of `rows`, multiple of `sub`, with tm*x_row_bytes <= target."""
    cap = _round_down(max(1, target_bytes // max(1, x_row_bytes)), sub)
    if rows <= cap or rows % sub != 0:
        return rows                              # single full-extent block
    tm = min(cap, _round_down(rows, sub))
    while tm > sub and rows % tm != 0:
        tm -= sub
    return tm if rows % tm == 0 else rows


def _plan_4d(shape, dtype):
    """(tm, vmem_limit) for the fused 4D kernel, or None -> XLA fallback."""
    N, C, H, W = shape
    R, L = N * C, H * W
    if R % 8 != 0:                               # kernel's sublane fold needs tm % 8 == 0
        return None
    itemsize = jnp.dtype(dtype).itemsize
    target, usable = _vmem_budgets()
    sub = _sublane_multiple(dtype)
    x_row = _padded_row_bytes(L, itemsize)
    tm = _pick_row_tile(R, x_row, target, sub)
    # double-buffered x + out tiles, lane-padded f32 gate column, ssq partial
    footprint = 2 * tm * (2 * x_row + 512) + 2 * 8 * 128 * 4
    if footprint + _VMEM_SLACK_BYTES > usable:
        return None                              # OOM guard (huge L / awkward R)
    return tm, max(32 << 20, footprint + _VMEM_SLACK_BYTES)


def _plan_2d(shape, dtype):
    """(k, tm, vmem_limit) for the 2D kernel, or None -> XLA elementwise."""
    N, C = shape
    itemsize = jnp.dtype(dtype).itemsize
    if N * C * itemsize < _SMALL_INPUT_BYTES:
        return None
    # Lane-densify a narrow width: free row-major view (N, C) -> (N//k, k*C).
    if C % 128 == 0:
        k = 1
    else:
        k0 = 128 // math.gcd(C, 128)
        if N % k0 != 0 or k0 * C > _MAX_LANE_WIDTH_2D:
            k = 1 if C >= 128 else None          # wide-ish: tolerable masked tail
        else:
            k = k0
            while 2 * k * C <= _MAX_LANE_WIDTH_2D and N % (2 * k) == 0:
                k *= 2
    if k is None:
        return None
    rows, cols = N // k, k * C
    target, usable = _vmem_budgets()
    sub = _sublane_multiple(dtype)
    row_bytes = _padded_row_bytes(cols, itemsize)
    tm = _pick_row_tile(rows, row_bytes, target, sub)
    footprint = 2 * tm * 2 * row_bytes + 2 * 8 * row_bytes   # x+out tiles + gate row
    if footprint + _VMEM_SLACK_BYTES > usable:
        return None
    return k, tm, max(32 << 20, footprint + _VMEM_SLACK_BYTES)


# ----------------------------------------------------------------------------
# Kernels
# ----------------------------------------------------------------------------
def _row_gate_mse_kernel(g_ref, x_ref, out_ref, ssq_ref):
    """out = g_row * x; emit an (8, 1) partial sum of (out - x)^2 for this tile.

    g_ref:   (tm, 1)  per-row gate column (row = one (n, c) pair), f32
    x_ref:   (tm, L)  activation tile, L = H*W on the lane axis (ANY size)
    out_ref: (tm, L)
    ssq_ref: (8, 1)   per-step SSE partial
    """
    x = x_ref[...]
    out = (x * g_ref[...]).astype(out_ref.dtype)
    out_ref[...] = out

    # MSE is computed on the materialized (possibly downcast) output, like
    # F.mse_loss(pruned_input, original_input).
    d = out.astype(jnp.float32) - x.astype(jnp.float32)
    d2 = d * d

    tm, L = d2.shape                                        # static
    # Sublane fold first (pure VPU vreg adds; layout-free leading-dim split),
    # then one tiny cross-lane reduce of an (8, L) array -- shape-agnostic in L.
    s = jnp.sum(d2.reshape(tm // 8, 8, L), axis=0)          # (8, L)
    ssq_ref[...] = jnp.sum(s, axis=-1, keepdims=True)       # (8, 1)


def _col_gate_kernel(g_ref, x_ref, out_ref):
    """2D path tile: out = gate_row * x (gate broadcasts over rows)."""
    out_ref[...] = (x_ref[...] * g_ref[...]).astype(out_ref.dtype)


# ----------------------------------------------------------------------------
# pallas_call builders (called from inside jitted wrappers)
# ----------------------------------------------------------------------------
def _row_gate_mse_pallas(x2d, g_col, tm, vmem_limit):
    """x2d: (R, L) = (N*C, H*W); g_col: (R, 1). Returns (g*x, sum((g*x - x)^2))."""
    R, L = x2d.shape
    n_blocks = R // tm
    itemsize = x2d.dtype.itemsize
    out, ssq = pl.pallas_call(
        _row_gate_mse_kernel,
        out_shape=(
            jax.ShapeDtypeStruct((R, L), x2d.dtype),
            jax.ShapeDtypeStruct((n_blocks * 8, 1), jnp.float32),
        ),
        grid_spec=pltpu.PrefetchScalarGridSpec(
            num_scalar_prefetch=0,
            grid=(n_blocks,),
            in_specs=[
                pl.BlockSpec((tm, 1), lambda i: (i, 0)),    # per-row gate column
                pl.BlockSpec((tm, L), lambda i: (i, 0)),    # x tile (lane axis = H*W)
            ],
            out_specs=[
                pl.BlockSpec((tm, L), lambda i: (i, 0)),    # gated output tile
                pl.BlockSpec((8, 1), lambda i: (i, 0)),     # per-step SSE partial
            ],
        ),
        compiler_params=pltpu.CompilerParams(
            dimension_semantics=("parallel",),              # carry-free grid axis
            vmem_limit_bytes=vmem_limit,
        ),
        cost_estimate=pl.CostEstimate(
            flops=5 * R * L,
            transcendentals=0,
            bytes_accessed=2 * R * L * itemsize + R * 4 + n_blocks * 32,
        ),
    )(g_col, x2d)
    return out, jnp.sum(ssq)


def _col_gate_pallas(x2d, g_row, tm, vmem_limit):
    """x2d: (R, C); g_row: (1, C). Returns g*x."""
    R, C = x2d.shape
    itemsize = x2d.dtype.itemsize
    return pl.pallas_call(
        _col_gate_kernel,
        out_shape=jax.ShapeDtypeStruct((R, C), x2d.dtype),
        grid_spec=pltpu.PrefetchScalarGridSpec(
            num_scalar_prefetch=0,
            grid=(R // tm,),
            in_specs=[
                pl.BlockSpec((1, C), lambda i: (0, 0)),     # gate row (constant block)
                pl.BlockSpec((tm, C), lambda i: (i, 0)),    # x tile
            ],
            out_specs=pl.BlockSpec((tm, C), lambda i: (i, 0)),
        ),
        compiler_params=pltpu.CompilerParams(
            dimension_semantics=("parallel",),
            vmem_limit_bytes=vmem_limit,
        ),
        cost_estimate=pl.CostEstimate(
            flops=R * C,
            transcendentals=0,
            bytes_accessed=2 * R * C * itemsize + C * 4,
        ),
    )(g_row, x2d)


# ----------------------------------------------------------------------------
# jitted top-level paths (the reshapes are free views; no transposes)
# ----------------------------------------------------------------------------
@jax.jit
def _virtual_gate_4d(x, gate):
    N, C, H, W = x.shape
    R, L = N * C, H * W
    tm, vmem_limit = _plan_4d(x.shape, x.dtype)             # static at trace time
    x2d = x.reshape(R, L)                                   # free view, no transpose
    g_col = jnp.broadcast_to(gate.astype(jnp.float32)[None, :], (N, C)).reshape(R, 1)
    out2d, sse = _row_gate_mse_pallas(x2d, g_col, tm, vmem_limit)
    return out2d.reshape(N, C, H, W), sse / jnp.float32(x.size)


@jax.jit
def _virtual_gate_4d_fallback(x, gate):
    # Used only when N*C is not a multiple of 8 or a single tile would not fit
    # the scoped-VMEM budget (e.g. enormous H*W): plain fused XLA elementwise.
    out = (x * gate[None, :, None, None]).astype(x.dtype)
    mse = jnp.mean((out.astype(jnp.float32) - x.astype(jnp.float32)) ** 2)
    return out, mse


@jax.jit
def _virtual_gate_2d(x, gate):
    N, C = x.shape
    k, tm, vmem_limit = _plan_2d(x.shape, x.dtype)          # static at trace time
    cols = k * C
    g_row = jnp.tile(gate.astype(jnp.float32), k).reshape(1, cols)
    out = _col_gate_pallas(x.reshape(N // k, cols), g_row, tm, vmem_limit)
    return out.reshape(N, C)


@jax.jit
def _virtual_gate_2d_small(x, gate):
    return (x * gate[None, :]).astype(x.dtype)


# ----------------------------------------------------------------------------
# Module-equivalent wrapper
# ----------------------------------------------------------------------------
class VirtualGate:
    """JAX/Pallas port of `virtual_gate`."""

    def __init__(self, width):
        self.g_w = 1
        self.width = width
        self.gate_f = jnp.ones((width,), dtype=jnp.float32)
        self.mse = None  # Python-side state, like the PyTorch module (eager use only)

    def set_structure_value(self, value):
        self.gate_f = jnp.asarray(value, dtype=jnp.float32)

    def reset_value(self):
        self.gate_f = jnp.ones((self.width,), dtype=jnp.float32)

    def collect_mse(self):
        return self.mse

    def __call__(self, x):
        gate = self.gate_f
        if x.ndim == 2:
            if _plan_2d(x.shape, x.dtype) is None:
                # tiny / degenerate: fused XLA elementwise beats a kernel launch
                return _virtual_gate_2d_small(x, gate)
            return _virtual_gate_2d(x, gate)
        elif x.ndim == 4:
            if _plan_4d(x.shape, x.dtype) is None:
                # TODO(synk): N*C not a multiple of 8 (rare) or tile too large for
                # scoped VMEM — handled by the plain fused XLA path instead.
                out, mse = _virtual_gate_4d_fallback(x, gate)
            else:
                out, mse = _virtual_gate_4d(x, gate)
            self.mse = mse
            return out
        raise ValueError("virtual_gate expects a 2D or 4D input")


# ----------------------------------------------------------------------------
# Main
# ----------------------------------------------------------------------------
if __name__ == "__main__":
    key = jax.random.PRNGKey(0)
    keys = jax.random.split(key, 8)
    k8, k9, k10, k11 = jax.random.split(keys[0], 4)

    def ref_4d(g, x):
        out = g[None, :, None, None] * x
        return out, jnp.mean((out - x) ** 2)

    # --- 4D, spec shape (H*W = 256): fused Pallas kernel ---
    width = 4
    gate = VirtualGate(width)
    gate.set_structure_value(jnp.linspace(0.0, 1.0, width, dtype=jnp.float32))
    x = jax.random.normal(keys[0], (2, width, 16, 16), dtype=jnp.float32)
    out = gate(x)
    mse = gate.collect_mse()
    jax.block_until_ready(out)
    jax.block_until_ready(mse)
    r_out, r_mse = ref_4d(gate.gate_f, x)
    assert out.shape == x.shape and out.dtype == x.dtype
    assert jnp.allclose(out, r_out, atol=1e-6, rtol=1e-6)
    assert jnp.allclose(mse, r_mse, atol=1e-6, rtol=1e-6)

    # --- 4D, 14x14 feature map (H*W = 196, NOT a multiple of 128): fused kernel ---
    g14 = VirtualGate(8)
    g14.set_structure_value(jnp.linspace(0.5, 1.5, 8, dtype=jnp.float32))
    x14 = jax.random.normal(keys[1], (2, 8, 14, 14), dtype=jnp.float32)
    out14 = g14(x14)
    jax.block_until_ready(out14)
    r_out, r_mse = ref_4d(g14.gate_f, x14)
    assert jnp.allclose(out14, r_out, atol=1e-6, rtol=1e-6)
    assert jnp.allclose(g14.collect_mse(), r_mse, atol=1e-6, rtol=1e-6)

    # --- 4D, 7x7 feature map (H*W = 49): fused kernel ---
    g7 = VirtualGate(64)
    g7.set_structure_value(jax.random.uniform(keys[2], (64,), dtype=jnp.float32))
    x7 = jax.random.normal(keys[3], (2, 64, 7, 7), dtype=jnp.float32)
    out7 = g7(x7)
    jax.block_until_ready(out7)
    r_out, r_mse = ref_4d(g7.gate_f, x7)
    assert jnp.allclose(out7, r_out, atol=1e-6, rtol=1e-6)
    assert jnp.allclose(g7.collect_mse(), r_mse, atol=1e-6, rtol=1e-6)

    # --- 4D, larger channel count: multi-step grid on the fused kernel ---
    gb = VirtualGate(1024)
    gb.set_structure_value(jax.random.uniform(keys[4], (1024,), dtype=jnp.float32))
    xb = jax.random.normal(keys[5], (8, 1024, 16, 16), dtype=jnp.float32)
    outb = gb(xb)
    jax.block_until_ready(outb)
    r_out, r_mse = ref_4d(gb.gate_f, xb)
    assert jnp.allclose(outb, r_out, atol=1e-6, rtol=1e-6)
    assert jnp.allclose(gb.collect_mse(), r_mse, atol=1e-5, rtol=1e-5)

    # --- 4D, N*C not a multiple of 8: XLA fallback path ---
    gf = VirtualGate(10)
    gf.set_structure_value(jnp.linspace(0.1, 1.0, 10, dtype=jnp.float32))
    xf = jax.random.normal(keys[6], (3, 10, 7, 7), dtype=jnp.float32)
    outf = gf(xf)
    jax.block_until_ready(outf)
    r_out, r_mse = ref_4d(gf.gate_f, xf)
    assert jnp.allclose(outf, r_out, atol=1e-6, rtol=1e-6)
    assert jnp.allclose(gf.collect_mse(), r_mse, atol=1e-6, rtol=1e-6)

    # --- 2D, tiny: short-circuit to XLA elementwise ---
    x2s = jax.random.normal(keys[7], (2, width), dtype=jnp.float32)
    out2s = gate(x2s)
    jax.block_until_ready(out2s)
    assert jnp.allclose(out2s, gate.gate_f[None, :] * x2s, atol=1e-6, rtol=1e-6)

    # --- 2D, lane-dense width: Pallas ---
    g2 = VirtualGate(256)
    g2.set_structure_value(jax.random.uniform(k8, (256,), dtype=jnp.float32))
    x2 = jax.random.normal(k9, (4096, 256), dtype=jnp.float32)
    out2 = g2(x2)
    jax.block_until_ready(out2)
    assert jnp.allclose(out2, g2.gate_f[None, :] * x2, atol=1e-6, rtol=1e-6)

    # --- 2D, narrow width (C = 8): lane-densified Pallas path ---
    g2n = VirtualGate(8)
    g2n.set_structure_value(jax.random.uniform(k10, (8,), dtype=jnp.float32))
    x2n = jax.random.normal(k11, (32768, 8), dtype=jnp.float32)
    out2n = g2n(x2n)
    jax.block_until_ready(out2n)
    assert jnp.allclose(out2n, g2n.gate_f[None, :] * x2n, atol=1e-6, rtol=1e-6)

    print("KERNEL_OK")
</pallas_src>

<mosaic_0001>
module attributes {stable_mosaic.version = 11 : i64} {
  func.func @_row_gate_mse_kernel(%arg0: i32, %arg1: memref<8x1xf32, #tpu.memory_space<vmem>>, %arg2: memref<8x256xf32, #tpu.memory_space<vmem>>, %arg3: memref<8x256xf32, #tpu.memory_space<vmem>>, %arg4: memref<8x1xf32, #tpu.memory_space<vmem>>) attributes {dimension_semantics = [#tpu.dimension_semantics<parallel>], iteration_bounds = array<i64: 1>, scalar_prefetch = 0 : i64, scratch_operands = 0 : i64, tpu.core_type = #tpu.core_type<tc>, window_params = [{transform_indices = @transform_0, window_bounds = array<i64: 8, 1>}, {transform_indices = @transform_1, window_bounds = array<i64: 8, 256>}, {transform_indices = @transform_2, window_bounds = array<i64: 8, 256>}, {transform_indices = @transform_3, window_bounds = array<i64: 8, 1>}]} {
    %c0 = arith.constant 0 : index
    %c0_0 = arith.constant 0 : index
    %0 = vector.load %arg2[%c0, %c0_0] : memref<8x256xf32, #tpu.memory_space<vmem>>, vector<8x256xf32>
    %c0_1 = arith.constant 0 : index
    %c0_2 = arith.constant 0 : index
    %1 = vector.load %arg1[%c0_1, %c0_2] : memref<8x1xf32, #tpu.memory_space<vmem>>, vector<8x1xf32>
    %2 = vector.broadcast %1 : vector<8x1xf32> to vector<8x256xf32>
    %3 = arith.mulf %0, %2 : vector<8x256xf32>
    %c0_3 = arith.constant 0 : index
    %c0_4 = arith.constant 0 : index
    %4 = vector.load %arg3[%c0_3, %c0_4] : memref<8x256xf32, #tpu.memory_space<vmem>>, vector<8x256xf32>
    tpu.vector_store %arg3[%c0_3, %c0_4], %3 {strides = array<i32>} : memref<8x256xf32, #tpu.memory_space<vmem>>, vector<8x256xf32>,
    %5 = arith.subf %3, %0 : vector<8x256xf32>
    %6 = arith.mulf %5, %5 : vector<8x256xf32>
    %7 = vector.shape_cast %6 : vector<8x256xf32> to vector<1x8x256xf32>
    %cst = arith.constant dense<0.000000e+00> : vector<8x256xf32>
    %8 = vector.multi_reduction <add>, %7, %cst [0] : vector<1x8x256xf32> to vector<8x256xf32>
    %cst_5 = arith.constant dense<0.000000e+00> : vector<8xf32>
    %9 = vector.multi_reduction <add>, %8, %cst_5 [1] : vector<8x256xf32> to vector<8xf32>
    %10 = vector.shape_cast %9 : vector<8xf32> to vector<8x1xf32>
    %c0_6 = arith.constant 0 : index
    %c0_7 = arith.constant 0 : index
    %11 = vector.load %arg4[%c0_6, %c0_7] : memref<8x1xf32, #tpu.memory_space<vmem>>, vector<8x1xf32>
    tpu.vector_store %arg4[%c0_6, %c0_7], %10 {strides = array<i32>} : memref<8x1xf32, #tpu.memory_space<vmem>>, vector<8x1xf32>,
    return
  }
  func.func @transform_0(%arg0: i32) -> (i32, i32) {
    %c0_i32 = arith.constant 0 : i32
    %c0_i32_0 = arith.constant 0 : i32
    return %arg0, %c0_i32 : i32, i32
  }
  func.func @transform_1(%arg0: i32) -> (i32, i32) {
    %c0_i32 = arith.constant 0 : i32
    %c0_i32_0 = arith.constant 0 : i32
    return %arg0, %c0_i32 : i32, i32
  }
  func.func @transform_2(%arg0: i32) -> (i32, i32) {
    %c0_i32 = arith.constant 0 : i32
    %c0_i32_0 = arith.constant 0 : i32
    return %arg0, %c0_i32 : i32, i32
  }
  func.func @transform_3(%arg0: i32) -> (i32, i32) {
    %c0_i32 = arith.constant 0 : i32
    %c0_i32_0 = arith.constant 0 : i32
    return %arg0, %c0_i32 : i32, i32
  }
}

</mosaic_0001>

<llo_original>
// kernel: _virtual_gate_4d.1
$region0: #{_virtual_gate_4d.1}
  #allocation0 [shape = 'u32[]', space=smem, size = 0x4, offset = 0x4, fixed_abs, tag = 'smem constant byte address 0x4 - core index']
  #allocation1 [shape = 'u32[144,128]{1,0:T(1,128)}', space=vmem, size = 0x12000, scoped, tag = 'internal scratch']
  %s0 = inlined_call_operand.vmem [shape: f32[8,1], index: 0, kind: input, shape index: {}]
  %s1 = inlined_call_operand.vmem [shape: f32[8,256], index: 1, kind: input, shape index: {}]
  %s2 = inlined_call_operand.vmem [shape: f32[8,256], index: 2, kind: output, shape index: {0}]
  %s3 = inlined_call_operand.vmem [shape: f32[8,1], index: 3, kind: output, shape index: {1}]
  %4 = xla_tuple %s2, %s3
  %s5 = sld [smem:[#allocation0]]
  $region26: #{_virtual_gate_4d.1} parent=0
    _
  %s7 = ssub.s32 1, %s5
  %s8 = scalar_select 0, %s7, %s5
  // Predicated region
  $region2: #{_virtual_gate_4d.1} parent=0 // pred_check
    _
  $region3: #{_virtual_gate_4d.1} parent=0 // pred_check_branch
    %10 = sbr.rel (0) target = $region5
  $region4: #{_virtual_gate_4d.1} parent=0 // pred_region
    _
  $region5: #{_virtual_gate_4d.1} parent=0 // pred_fallthru
    _
  // Predicated region
  $region6: #{_virtual_gate_4d.1} parent=0 // pred_check
    _
  $region7: #{_virtual_gate_4d.1} parent=0 // pred_check_branch
    %12 = sbr.rel (0) target = $region9
  $region8: #{_virtual_gate_4d.1} parent=0 // pred_region
    _
  $region9: #{_virtual_gate_4d.1} parent=0 // pred_fallthru
    _
  %v13 = vld [vmem:[%s1] sm:$0xff]
  %v14 = vld [vmem:[%s1 + $0x8] sm:$0xff]
  %v15 = vld [vmem:[%s0] sm:$0xff]
  %17 = vset.pattern.permute.xlu0 0
  %18 = vperm.xlu0 %17, %v15
  %v19 = vpop.permute.xlu0 %18
  %v21 = vmul.f32 %v13, %v19
  %v22 = vmul.f32 %v14, %v19
  %23 = vst [vmem:[%s2] sm:$0xff] %v21
  %24 = vst [vmem:[%s2 + $0x8] sm:$0xff] %v22
  %v25 = vsub.f32 %v21, %v13
  %v26 = vsub.f32 %v22, %v14
  %v27 = vmul.f32 %v25, %v25
  %v28 = vmul.f32 %v26, %v26
  %v29 = vadd.f32 %v27, 0.0
  %v30 = vadd.f32 %v28, 0.0
  %v31 = vadd.f32 %v29, %v30
  %32 = vadd.xlane.f32.xlu0 %v31
  %v33 = vpop.xlane.xlu0 %32
  %vm34 = vcmask 7168
  %35 = vst.msk [vmem:[%s3] sm:$0xff] %vm34, %v33
  // Predicated region
  $region10: #{_virtual_gate_4d.1} parent=0 // pred_check
    _
  $region11: #{_virtual_gate_4d.1} parent=0 // pred_check_branch
    %37 = sbr.rel (0) target = $region13
  $region12: #{_virtual_gate_4d.1} parent=0 // pred_region
    _
  $region13: #{_virtual_gate_4d.1} parent=0 // pred_fallthru
    _
  // Predicated region
  $region14: #{_virtual_gate_4d.1} parent=0 // pred_check
    _
  $region15: #{_virtual_gate_4d.1} parent=0 // pred_check_branch
    %39 = sbr.rel (0) target = $region17
  $region16: #{_virtual_gate_4d.1} parent=0 // pred_region
    _
  $region17: #{_virtual_gate_4d.1} parent=0 // pred_fallthru
    _
  // Predicated region
  $region18: #{_virtual_gate_4d.1} parent=0 // pred_check
    _
  $region19: #{_virtual_gate_4d.1} parent=0 // pred_check_branch
    %41 = sbr.rel (0) target = $region21
  $region20: #{_virtual_gate_4d.1} parent=0 // pred_region
    _
  $region21: #{_virtual_gate_4d.1} parent=0 // pred_fallthru
    _
  // Predicated region
  $region22: #{_virtual_gate_4d.1} parent=0 // pred_check
    _
  $region23: #{_virtual_gate_4d.1} parent=0 // pred_check_branch
    %43 = sbr.rel (0) target = $region25
  $region24: #{_virtual_gate_4d.1} parent=0 // pred_region
    _
  $region25: #{_virtual_gate_4d.1} parent=0 // pred_fallthru
    _

</llo_original>
